<compile_context>
chip_gen: v7x
topology: tpu7x:2x2x1
jax: 0.10.0
libtpu: 0.0.40
codegen_flags: <defaults>
</compile_context>

<pallas_src>
import numpy as np
import jax
import jax.numpy as jnp
from jax.experimental import pallas as pl
from jax.experimental.pallas import tpu as pltpu

LANES = 128
SUBLANES = 8


def _cdiv(a, b):
    return -(-a // b)


def _round_up(a, b):
    return _cdiv(a, b) * b


def _make_charbonnier_kernel(tm, bpc, eps):
    eps2 = eps * eps  # folded into the kernel as an f32 immediate

    def kernel(pred_ref, targ_ref, out_ref, acc_ref):
        i = pl.program_id(1)  # "arbitrary" streaming/reduction axis

        @pl.when(i == 0)
        def _init():
            acc_ref[...] = jnp.zeros_like(acc_ref)

        d = targ_ref[...] - pred_ref[...]
        v = jnp.sqrt(d * d + eps2)                      # VALU + EUP, no XLU

        # Per-(sublane, lane) partial sums: sublane-aligned reshape + vreg adds
        # only — no cross-lane work and no masked scalar stores.
        acc_ref[...] += jnp.sum(v.reshape(tm // SUBLANES, SUBLANES, LANES), axis=0)

        @pl.when(i == bpc - 1)
        def _finalize():
            out_ref[0] = acc_ref[...]

    return kernel


def charbonnier_loss(pred, target, *, loss_weight=1.0, eps=1e-3, block_rows=4096):
    """JAX/Pallas equivalent of CharbonnierLoss.forward (reduction='mean')."""
    assert pred.shape == target.shape, (pred.shape, target.shape)
    n = int(np.prod(pred.shape))

    p = pred.reshape(-1).astype(jnp.float32)
    t = target.reshape(-1).astype(jnp.float32)

    # Lane-dense layout: (rows, 128), rows a multiple of the tile height.
    rows_min = _cdiv(n, LANES)
    tm = min(int(block_rows), _round_up(rows_min, SUBLANES))
    tm = _round_up(tm, SUBLANES)                       # obey the (8, 128) rule
    total_blocks = _cdiv(rows_min, tm)
    nc = 2 if total_blocks >= 2 else 1                 # 2 partitions -> both TCs on v7x
    bpc = _cdiv(total_blocks, nc)                      # blocks per partition
    rows = nc * bpc * tm
    pad = rows * LANES - n
    if pad:
        p = jnp.pad(p, (0, pad))                       # zero pad: d = 0 there
        t = jnp.pad(t, (0, pad))
    p2 = p.reshape(rows, LANES)
    t2 = t.reshape(rows, LANES)

    kernel = _make_charbonnier_kernel(tm, bpc, float(eps))
    n_padded = rows * LANES

    in_spec = pl.BlockSpec((tm, LANES), lambda c, i: (c * bpc + i, 0))
    partials = pl.pallas_call(
        kernel,
        out_shape=jax.ShapeDtypeStruct((nc, SUBLANES, LANES), jnp.float32),
        grid=(nc, bpc),
        in_specs=[in_spec, in_spec],
        out_specs=pl.BlockSpec((1, SUBLANES, LANES), lambda c, i: (c, 0, 0)),
        scratch_shapes=[pltpu.VMEM((SUBLANES, LANES), jnp.float32)],
        compiler_params=pltpu.CompilerParams(
            dimension_semantics=("parallel", "arbitrary")),
        cost_estimate=pl.CostEstimate(
            flops=4 * n_padded,
            transcendentals=n_padded,
            bytes_accessed=2 * n_padded * 4 + nc * SUBLANES * LANES * 4),
    )(p2, t2)

    total = jnp.sum(partials)
    if pad:
        # Each zero-padded element contributed exactly sqrt(eps^2) (d == 0);
        # remove that bias here instead of masking inside the kernel.
        total = total - pad * jnp.sqrt(jnp.asarray(eps * eps, jnp.float32))
    return (loss_weight * total) / n


# --------------------------- pure-JAX reference ---------------------------
def _ref_charbonnier(pred, target, loss_weight=1.0, eps=1e-3):
    d = target.astype(jnp.float32) - pred.astype(jnp.float32)
    return loss_weight * jnp.mean(jnp.sqrt(d * d + eps * eps))


if __name__ == "__main__":
    key = jax.random.PRNGKey(0)
    k1, k2, k3, k4, k5, k6 = jax.random.split(key, 6)

    # 1) Base case: (2, 4, 16, 16) -> exactly lane-aligned (2048 = 16 x 128).
    pred = jax.random.uniform(k1, (2, 4, 16, 16), jnp.float32)
    targ = jax.random.uniform(k2, (2, 4, 16, 16), jnp.float32)
    out = jax.block_until_ready(charbonnier_loss(pred, targ))
    ref = jax.block_until_ready(_ref_charbonnier(pred, targ))
    np.testing.assert_allclose(np.asarray(out), np.asarray(ref), rtol=3e-5, atol=1e-6)

    # 2) Ragged case: exercises zero-padding + wrapper-side bias correction.
    pred_r = jax.random.uniform(k3, (2, 3, 17, 19), jnp.float32)
    targ_r = jax.random.uniform(k4, (2, 3, 17, 19), jnp.float32)
    out_r = jax.block_until_ready(charbonnier_loss(pred_r, targ_r))
    ref_r = jax.block_until_ready(_ref_charbonnier(pred_r, targ_r))
    np.testing.assert_allclose(np.asarray(out_r), np.asarray(ref_r), rtol=3e-5, atol=1e-6)

    # 3) Multi-block case: small block_rows forces a (parallel, arbitrary) grid
    #    with multi-step accumulation (nc=2, bpc=3).
    pred_m = jax.random.uniform(k5, (2, 4, 64, 96), jnp.float32)
    targ_m = jax.random.uniform(k6, (2, 4, 64, 96), jnp.float32)
    out_m = jax.block_until_ready(charbonnier_loss(pred_m, targ_m, block_rows=64))
    ref_m = jax.block_until_ready(_ref_charbonnier(pred_m, targ_m))
    np.testing.assert_allclose(np.asarray(out_m), np.asarray(ref_m), rtol=3e-5, atol=1e-6)

    assert np.isfinite(np.asarray(out)) and np.isfinite(np.asarray(out_r)) \
        and np.isfinite(np.asarray(out_m))
    print("KERNEL_OK")
</pallas_src>

<mosaic_0001>
module attributes {stable_mosaic.version = 11 : i64} {
  func.func @kernel(%arg0: i32, %arg1: i32, %arg2: memref<16x128xf32, #tpu.memory_space<vmem>>, %arg3: memref<16x128xf32, #tpu.memory_space<vmem>>, %arg4: memref<1x8x128xf32, #tpu.memory_space<vmem>>, %arg5: memref<8x128xf32, #tpu.memory_space<vmem>>) attributes {dimension_semantics = [#tpu.dimension_semantics<parallel>, #tpu.dimension_semantics<arbitrary>], iteration_bounds = array<i64: 1, 1>, scalar_prefetch = 0 : i64, scratch_operands = 1 : i64, tpu.core_type = #tpu.core_type<tc>, window_params = [{transform_indices = @transform_0, window_bounds = array<i64: 16, 128>}, {transform_indices = @transform_1, window_bounds = array<i64: 16, 128>}, {transform_indices = @transform_2, window_bounds = array<i64: 1, 8, 128>}]} {
    %c0_i32 = arith.constant 0 : i32
    %0 = arith.cmpi eq, %arg1, %c0_i32 : i32
    %1 = arith.extui %0 : i1 to i32
    %c0_i32_0 = arith.constant 0 : i32
    %2 = arith.cmpi ne, %1, %c0_i32_0 : i32
    scf.if %2 {
      %cst_11 = arith.constant 0.000000e+00 : f32
      %18 = vector.broadcast %cst_11 : f32 to vector<8x128xf32>
      %c0_12 = arith.constant 0 : index
      %c0_13 = arith.constant 0 : index
      %19 = vector.load %arg5[%c0_12, %c0_13] : memref<8x128xf32, #tpu.memory_space<vmem>>, vector<8x128xf32>
      tpu.vector_store %arg5[%c0_12, %c0_13], %18 {strides = array<i32>} : memref<8x128xf32, #tpu.memory_space<vmem>>, vector<8x128xf32>,
    } else {
    }
    %c0 = arith.constant 0 : index
    %c0_1 = arith.constant 0 : index
    %3 = vector.load %arg3[%c0, %c0_1] : memref<16x128xf32, #tpu.memory_space<vmem>>, vector<16x128xf32>
    %c0_2 = arith.constant 0 : index
    %c0_3 = arith.constant 0 : index
    %4 = vector.load %arg2[%c0_2, %c0_3] : memref<16x128xf32, #tpu.memory_space<vmem>>, vector<16x128xf32>
    %5 = arith.subf %3, %4 : vector<16x128xf32>
    %6 = arith.mulf %5, %5 : vector<16x128xf32>
    %cst = arith.constant 9.99999997E-7 : f32
    %7 = vector.broadcast %cst : f32 to vector<16x128xf32>
    %8 = arith.addf %6, %7 : vector<16x128xf32>
    %9 = math.sqrt %8 : vector<16x128xf32>
    %c0_4 = arith.constant 0 : index
    %c0_5 = arith.constant 0 : index
    %10 = vector.load %arg5[%c0_4, %c0_5] : memref<8x128xf32, #tpu.memory_space<vmem>>, vector<8x128xf32>
    %11 = vector.shape_cast %9 : vector<16x128xf32> to vector<2x8x128xf32>
    %cst_6 = arith.constant dense<0.000000e+00> : vector<8x128xf32>
    %12 = vector.multi_reduction <add>, %11, %cst_6 [0] : vector<2x8x128xf32> to vector<8x128xf32>
    %13 = arith.addf %10, %12 : vector<8x128xf32>
    %c0_7 = arith.constant 0 : index
    %c0_8 = arith.constant 0 : index
    %14 = vector.load %arg5[%c0_7, %c0_8] : memref<8x128xf32, #tpu.memory_space<vmem>>, vector<8x128xf32>
    tpu.vector_store %arg5[%c0_7, %c0_8], %13 {strides = array<i32>} : memref<8x128xf32, #tpu.memory_space<vmem>>, vector<8x128xf32>,
    %c0_i32_9 = arith.constant 0 : i32
    %15 = arith.cmpi eq, %arg1, %c0_i32_9 : i32
    %16 = arith.extui %15 : i1 to i32
    %c0_i32_10 = arith.constant 0 : i32
    %17 = arith.cmpi ne, %16, %c0_i32_10 : i32
    scf.if %17 {
      %c0_11 = arith.constant 0 : index
      %c0_12 = arith.constant 0 : index
      %18 = vector.load %arg5[%c0_11, %c0_12] : memref<8x128xf32, #tpu.memory_space<vmem>>, vector<8x128xf32>
      %c0_13 = arith.constant 0 : index
      %c0_14 = arith.constant 0 : index
      %c0_15 = arith.constant 0 : index
      %19 = vector.load %arg4[%c0_13, %c0_14, %c0_15] : memref<1x8x128xf32, #tpu.memory_space<vmem>>, vector<1x8x128xf32>
      %20 = vector.shape_cast %19 : vector<1x8x128xf32> to vector<8x128xf32>
      %21 = vector.shape_cast %18 : vector<8x128xf32> to vector<1x8x128xf32>
      tpu.vector_store %arg4[%c0_13, %c0_14, %c0_15], %21 {strides = array<i32>} : memref<1x8x128xf32, #tpu.memory_space<vmem>>, vector<1x8x128xf32>,
    } else {
    }
    return
  }
  func.func @transform_0(%arg0: i32, %arg1: i32) -> (i32, i32) {
    %c1_i32 = arith.constant 1 : i32
    %0 = arith.muli %arg0, %c1_i32 : i32
    %1 = arith.addi %0, %arg1 : i32
    %c0_i32 = arith.constant 0 : i32
    %c0_i32_0 = arith.constant 0 : i32
    return %1, %c0_i32 : i32, i32
  }
  func.func @transform_1(%arg0: i32, %arg1: i32) -> (i32, i32) {
    %c1_i32 = arith.constant 1 : i32
    %0 = arith.muli %arg0, %c1_i32 : i32
    %1 = arith.addi %0, %arg1 : i32
    %c0_i32 = arith.constant 0 : i32
    %c0_i32_0 = arith.constant 0 : i32
    return %1, %c0_i32 : i32, i32
  }
  func.func @transform_2(%arg0: i32, %arg1: i32) -> (i32, i32, i32) {
    %c0_i32 = arith.constant 0 : i32
    %c0_i32_0 = arith.constant 0 : i32
    %c0_i32_1 = arith.constant 0 : i32
    return %arg0, %c0_i32, %c0_i32_0 : i32, i32, i32
  }
}

</mosaic_0001>

<llo_original>
// kernel: tpu_custom_call.1
$region0: #{tpu_custom_call.1}
  #allocation0 [shape = 'u32[]', space=smem, size = 0x4, offset = 0x4, fixed_abs, tag = 'smem constant byte address 0x4 - core index']
  #allocation1 [shape = 'u32[144,128]{1,0:T(1,128)}', space=vmem, size = 0x12000, scoped, tag = 'internal scratch']
  #allocation2 [shape = 'f32[8,128]{1,0:T(8,128)}', space=vmem, size = 0x1000, scoped, tag = 'scratch operand']
  %s0 = inlined_call_operand.hbm [shape: f32[16,128], index: 0, kind: input, shape index: {}]
  %s1 = inlined_call_operand.hbm [shape: f32[16,128], index: 1, kind: input, shape index: {}]
  %s2 = inlined_call_operand.hbm [shape: f32[1,8,128], index: 2, kind: output, shape index: {}]
  %s3 = sld [smem:[#allocation0]]
  $region34: #{tpu_custom_call.1} parent=0
    _
  %s5 = ssub.s32 1, %s3
  %s6 = scalar_select 0, %s5, %s3
  $region1: #{tpu_custom_call.1} parent=0
    #allocation3 [shape = 'u8[8192]{0}', space=vmem, size = 0x2000, scoped, tag = 'input window, operand 0, single buffered']
    #allocation4 [shape = 's32[1]{0}', space=sflag, size = 0x4, scoped, tag = 'scoped memory for tpu_custom_call.1']
    #allocation5 [shape = 's32[1]{0}', space=sflag, size = 0x4, scoped, tag = 'scoped memory for tpu_custom_call.1']
    #allocation6 [shape = 'u8[8192]{0}', space=vmem, size = 0x2000, scoped, tag = 'input window, operand 1, single buffered']
    #allocation7 [shape = 's32[1]{0}', space=sflag, size = 0x4, scoped, tag = 'scoped memory for tpu_custom_call.1']
    #allocation8 [shape = 'u8[4096]{0}', space=vmem, size = 0x1000, scoped, tag = 'output window, operand 0, single buffered']
    %7 = vsyncpa [#allocation4], 0
    %8 = vsyncpa [#allocation7], 0
    %9 = vsyncpa [#allocation5], 0
    // Predicated region
    $region2: #{tpu_custom_call.1} parent=1 // pred_check
      _
    $region3: #{tpu_custom_call.1} parent=1 // pred_check_branch
      %11 = sbr.rel (0) target = $region5
    $region4: #{tpu_custom_call.1} parent=1 // pred_region
      %s12 = sadd.s32 0, 0
      %s13 = smul.u32 2, %s12
      %s15 = ssub.s32 256, 256
      %16 = vsyncadd [#allocation4], %s15
      %s17 = smul.addr %s13, 128
      %s18 = scalar_lea.hbm %s0, %s17
      %s19 = sshll.u32 [#allocation3], 4
      %s20 = int_to_ptr.vmem [resolvable:$true] %s19
      %25 = dma.hbm_to_vmem [thread:$0]  %s18, 256, %s20, [#allocation4], 128, 128, 8
    $region5: #{tpu_custom_call.1} parent=1 // pred_fallthru
      _
    // Predicated region
    $region6: #{tpu_custom_call.1} parent=1 // pred_check
      _
    $region7: #{tpu_custom_call.1} parent=1 // pred_check_branch
      %27 = sbr.rel (0) target = $region9
    $region8: #{tpu_custom_call.1} parent=1 // pred_region
      %s28 = sadd.s32 0, 0
      %s29 = smul.u32 2, %s28
      %s31 = ssub.s32 256, 256
      %32 = vsyncadd [#allocation7], %s31
      %s33 = smul.addr %s29, 128
      %s34 = scalar_lea.hbm %s1, %s33
      %s35 = sshll.u32 [#allocation6], 4
      %s36 = int_to_ptr.vmem [resolvable:$true] %s35
      %41 = dma.hbm_to_vmem [thread:$0]  %s34, 256, %s36, [#allocation7], 128, 128, 8
    $region9: #{tpu_custom_call.1} parent=1 // pred_fallthru
      _
    // Predicated region
    $region10: #{tpu_custom_call.1} parent=1 // pred_check
      _
    $region11: #{tpu_custom_call.1} parent=1 // pred_check_branch
      %43 = sbr.rel (0) target = $region13
    $region12: #{tpu_custom_call.1} parent=1 // pred_region
      %44 = dma.done [#allocation4], 256
    $region13: #{tpu_custom_call.1} parent=1 // pred_fallthru
      _
    // Predicated region
    $region14: #{tpu_custom_call.1} parent=1 // pred_check
      _
    $region15: #{tpu_custom_call.1} parent=1 // pred_check_branch
      %46 = sbr.rel (0) target = $region17
    $region16: #{tpu_custom_call.1} parent=1 // pred_region
      %47 = dma.done [#allocation7], 256
    $region17: #{tpu_custom_call.1} parent=1 // pred_fallthru
      _
    %s48 = sadd.s32 0, 0
    %s49 = smul.u32 2, %s48
    %s50 = sadd.s32 0, 0
    %s51 = smul.u32 2, %s50
    %p52 = scmp.eq.s32.totalorder 0, 0
    // Predicated region
    $region18: #{tpu_custom_call.1} parent=1 // pred_check
      %p53 = pneg %p52
    $region19: #{tpu_custom_call.1} parent=1 // pred_check_branch
      %55 = sbr.rel (%p53) target = $region21
    $region20: #{tpu_custom_call.1} parent=1 // pred_region
      %56 = vst [vmem:[#allocation2] sm:$0xff] 0.0
    $region21: #{tpu_custom_call.1} parent=1 // pred_fallthru
      _
    %v57 = vld [vmem:[#allocation6] sm:$0xff]
    %v58 = vld [vmem:[#allocation6 + $0x8] sm:$0xff]
    %v59 = vld [vmem:[#allocation3] sm:$0xff]
    %v60 = vld [vmem:[#allocation3 + $0x8] sm:$0xff]
    %v61 = vsub.f32 %v57, %v59
    %v62 = vsub.f32 %v58, %v60
    %v63 = vmul.f32 %v61, %v61
    %v64 = vmul.f32 %v62, %v62
    %v65 = vadd.f32 %v63, 1e-06
    %v66 = vadd.f32 %v64, 1e-06
    %v67 = vrsqrt.pop %v65
    %v68 = vmul.f32 %v65, %v67
    %vm69 = vcmp.eq.f32.partialorder %v65, inf
    %v70 = vsel %vm69, %v65, %v68
    %vm71 = vcmp.eq.f32.partialorder %v65, 0.0
    %v72 = vand.u32 %v65, 2147483648
    %v73 = vsel %vm71, %v72, %v70
    %v74 = vrsqrt.pop %v66
    %v75 = vmul.f32 %v66, %v74
    %vm76 = vcmp.eq.f32.partialorder %v66, inf
    %v77 = vsel %vm76, %v66, %v75
    %vm78 = vcmp.eq.f32.partialorder %v66, 0.0
    %v79 = vand.u32 %v66, 2147483648
    %v80 = vsel %vm78, %v79, %v77
    %v81 = vld [vmem:[#allocation2] sm:$0xff]
    %v82 = vadd.f32 %v73, %v80
    %v83 = vadd.f32 %v81, %v82
    %84 = vst [vmem:[#allocation2] sm:$0xff] %v83
    // Predicated region
    $region22: #{tpu_custom_call.1} parent=1 // pred_check
      %p85 = pneg %p52
    $region23: #{tpu_custom_call.1} parent=1 // pred_check_branch
      %87 = sbr.rel (%p85) target = $region25
    $region24: #{tpu_custom_call.1} parent=1 // pred_region
      %v88 = vld [vmem:[#allocation2] sm:$0xff]
      %89 = vst [vmem:[#allocation8] sm:$0xff] %v88
    $region25: #{tpu_custom_call.1} parent=1 // pred_fallthru
      _
    // Predicated region
    $region26: #{tpu_custom_call.1} parent=1 // pred_check
      _
    $region27: #{tpu_custom_call.1} parent=1 // pred_check_branch
      %91 = sbr.rel (0) target = $region29
    $region28: #{tpu_custom_call.1} parent=1 // pred_region
      %s93 = ssub.s32 128, 128
      %94 = vsyncadd [#allocation5], %s93
      %s96 = sshll.u32 [#allocation8], 4
      %s97 = int_to_ptr.vmem [resolvable:$true] %s96
      %99 = dma.vmem_to_hbm [thread:$0]  %s97, 128, %s2, [#allocation5]
    $region29: #{tpu_custom_call.1} parent=1 // pred_fallthru
      _
    // Predicated region
    $region30: #{tpu_custom_call.1} parent=1 // pred_check
      _
    $region31: #{tpu_custom_call.1} parent=1 // pred_check_branch
      %101 = sbr.rel (0) target = $region33
    $region32: #{tpu_custom_call.1} parent=1 // pred_region
      %102 = dma.done [#allocation5], 128
    $region33: #{tpu_custom_call.1} parent=1 // pred_fallthru
      _
    %103 = vsyncpa [#allocation4], 1
    %104 = vsyncpa [#allocation7], 1
    %105 = vsyncpa [#allocation5], 1

</llo_original>
